<compile_context>
chip_gen: v6e
topology: v6e:2x2x1
jax: 0.10.0
libtpu: 0.0.40
codegen_flags: <defaults>
</compile_context>

<pallas_src>
import functools

import jax
import jax.numpy as jnp
from jax.experimental import pallas as pl
from jax.experimental.pallas import tpu as pltpu

MARGIN = 0.6           # static hyper-parameter (self.margin)
HINGE_PROXYNCA = True  # static hyper-parameter (self.hinge_proxynca)


def _lsc_kernel(eta_ref, sim_ref, tgt_ref, out_ref, *, batch_size, tile_b):
    i = pl.program_id(0)
    eta = eta_ref[0, 0]

    # scale + margin, then per-row max stabilization (max AFTER scaling:
    # eta is learnable and may go negative, so do not hoist it).
    s = eta * (sim_ref[...].astype(jnp.float32) - MARGIN)        # (TB, C)
    s = s - jnp.max(s, axis=1, keepdims=True)                    # rows <= 0

    tb, c = s.shape
    class_ids = jax.lax.broadcasted_iota(jnp.int32, (tb, c), 1)
    onehot = class_ids == tgt_ref[...]                           # (TB, C)

    # numerator = s[row, target_row]
    numerator = jnp.sum(jnp.where(onehot, s, 0.0), axis=1, keepdims=True)  # (TB,1)
    sum_exp = jnp.sum(jnp.exp(s), axis=1, keepdims=True)                   # (TB,1)
    # PyTorch zeroes the target column before exp (contributes exp(0)=1);
    # exact rewrite: subtract exp(numerator), add 1.
    lse = jnp.log(sum_exp - jnp.exp(numerator) + 1.0)                      # (TB,1)

    losses = lse - numerator                                     # = -(num - lse)
    if HINGE_PROXYNCA:
        losses = jnp.maximum(losses, 0.0)

    # Mask padded remainder rows of the last batch tile.
    row_ids = i * tile_b + jax.lax.broadcasted_iota(jnp.int32, (tb, 1), 0)
    losses = jnp.where(row_ids < batch_size, losses, 0.0)

    # Lane-dense per-tile partial sum: value in lane 0, zeros elsewhere.
    tile_sum = jnp.sum(losses)
    lane = jax.lax.broadcasted_iota(jnp.int32, (1, 128), 1)
    out_ref[...] = jnp.where(lane == 0, tile_sum, 0.0)


def lsc_loss(similarities, targets, eta, *, tile_b=None):
    """similarities: (B, C) float (f32/bf16), targets: (B,) int, eta: scalar."""
    b, c = similarities.shape
    itemsize = jnp.dtype(similarities.dtype).itemsize
    sublane = 8 if itemsize >= 4 else 16            # f32 / bf16 sublane packing

    if tile_b is None:
        # Cap the similarities tile at ~8 MiB so 2x double-buffered input
        # tiles + targets + scratch stay well under v7x's ~32 MiB scoped VMEM
        # (and trivially under v5e/v6e's budget).
        max_tile_bytes = 8 * 1024 * 1024
        tile_b = max(sublane,
                     (max_tile_bytes // max(c * itemsize, 1)) // sublane * sublane)
    if tile_b >= b:
        tile_b = b                                   # single full-batch block
    else:
        tile_b = max(sublane, (tile_b // sublane) * sublane)
    num_tiles = pl.cdiv(b, tile_b)

    eta_arr = jnp.asarray(eta, jnp.float32).reshape(1, 1)
    tgt = targets.astype(jnp.int32).reshape(b, 1)

    kernel = functools.partial(_lsc_kernel, batch_size=b, tile_b=tile_b)

    partials = pl.pallas_call(
        kernel,
        out_shape=jax.ShapeDtypeStruct((1, num_tiles * 128), jnp.float32),
        grid=(num_tiles,),
        in_specs=[
            pl.BlockSpec(memory_space=pltpu.SMEM),           # eta (1,1) scalar
            pl.BlockSpec((tile_b, c), lambda i: (i, 0)),     # similarities tile
            pl.BlockSpec((tile_b, 1), lambda i: (i, 0)),     # targets tile
        ],
        out_specs=pl.BlockSpec((1, 128), lambda i: (0, i)),  # lane-dense partials
        compiler_params=pltpu.CompilerParams(
            dimension_semantics=("parallel",)),
    )(eta_arr, similarities, tgt)

    # Final mean over the TRUE batch size (padded rows were zeroed in-kernel,
    # extra lanes are zero).
    return jnp.sum(partials) / jnp.float32(b)


def lsc_loss_ref(similarities, targets, eta):
    """Pure-JAX reference mirroring the PyTorch forward (exclude_pos path)."""
    s = eta * (similarities.astype(jnp.float32) - MARGIN)
    s = s - jnp.max(s, axis=1, keepdims=True)
    b = s.shape[0]
    numerator = s[jnp.arange(b), targets]
    denominator = s.at[jnp.arange(b), targets].set(0.0)
    losses = numerator - jnp.log(jnp.sum(jnp.exp(denominator), axis=-1))
    losses = -losses
    if HINGE_PROXYNCA:
        losses = jnp.maximum(losses, 0.0)
    return jnp.mean(losses)


if __name__ == "__main__":
    key = jax.random.PRNGKey(0)
    k_sim1, k_tgt1, k_sim2, k_tgt2 = jax.random.split(key, 4)

    # Case 1: small single-tile path (matches the module's toy shapes).
    b1, c1 = 8, 16
    sim1 = jax.random.normal(k_sim1, (b1, c1), jnp.float32)
    tgt1 = jax.random.randint(k_tgt1, (b1,), 0, c1, jnp.int32)
    eta1 = jnp.float32(1.0)   # deterministic init of nn.Parameter([1.0])
    out1 = jax.block_until_ready(lsc_loss(sim1, tgt1, eta1))
    ref1 = jax.block_until_ready(lsc_loss_ref(sim1, tgt1, eta1))
    assert jnp.allclose(out1, ref1, rtol=1e-5, atol=1e-5), (out1, ref1)

    # Case 2: non-divisible batch with a forced small tile -> exercises the
    # batch grid, parallel partial sums and remainder-row masking.
    b2, c2 = 20, 40
    sim2 = jax.random.normal(k_sim2, (b2, c2), jnp.float32)
    tgt2 = jax.random.randint(k_tgt2, (b2,), 0, c2, jnp.int32)
    eta2 = jnp.float32(1.3)
    out2 = jax.block_until_ready(lsc_loss(sim2, tgt2, eta2, tile_b=8))
    ref2 = jax.block_until_ready(lsc_loss_ref(sim2, tgt2, eta2))
    assert jnp.allclose(out2, ref2, rtol=1e-5, atol=1e-5), (out2, ref2)

    # Case 3: bf16 transport (cast to f32 happens in-kernel, not the wrapper).
    sim3 = sim2.astype(jnp.bfloat16)
    out3 = jax.block_until_ready(lsc_loss(sim3, tgt2, eta2, tile_b=16))
    ref3 = jax.block_until_ready(lsc_loss_ref(sim3, tgt2, eta2))
    assert jnp.allclose(out3, ref3, rtol=1e-5, atol=1e-5), (out3, ref3)

    print("KERNEL_OK")
</pallas_src>

<mosaic_0001>
module attributes {stable_mosaic.version = 11 : i64} {
  func.func @_lsc_kernel(%arg0: i32, %arg1: memref<1x1xf32, #tpu.memory_space<smem>>, %arg2: memref<8x16xf32, #tpu.memory_space<vmem>>, %arg3: memref<8x1xi32, #tpu.memory_space<vmem>>, %arg4: memref<1x128xf32, #tpu.memory_space<vmem>>) attributes {dimension_semantics = [#tpu.dimension_semantics<parallel>], iteration_bounds = array<i64: 1>, scalar_prefetch = 0 : i64, scratch_operands = 0 : i64, tpu.core_type = #tpu.core_type<tc>, window_params = [{transform_indices = @transform_0, window_bounds = array<i64: 1, 1>}, {transform_indices = @transform_1, window_bounds = array<i64: 8, 16>}, {transform_indices = @transform_2, window_bounds = array<i64: 8, 1>}, {transform_indices = @transform_3, window_bounds = array<i64: 1, 128>}]} {
    %c0 = arith.constant 0 : index
    %c0_0 = arith.constant 0 : index
    %0 = memref.load %arg1[%c0, %c0_0] : memref<1x1xf32, #tpu.memory_space<smem>>
    %c0_1 = arith.constant 0 : index
    %c0_2 = arith.constant 0 : index
    %1 = vector.load %arg2[%c0_1, %c0_2] : memref<8x16xf32, #tpu.memory_space<vmem>>, vector<8x16xf32>
    %cst = arith.constant 6.000000e-01 : f32
    %2 = vector.broadcast %cst : f32 to vector<8x16xf32>
    %3 = arith.subf %1, %2 : vector<8x16xf32>
    %4 = vector.broadcast %0 : f32 to vector<8x16xf32>
    %5 = arith.mulf %4, %3 : vector<8x16xf32>
    %cst_3 = arith.constant dense<0xFF800000> : vector<8xf32>
    %6 = vector.multi_reduction <maximumf>, %5, %cst_3 [1] : vector<8x16xf32> to vector<8xf32>
    %7 = vector.shape_cast %6 : vector<8xf32> to vector<8x1xf32>
    %8 = vector.broadcast %7 : vector<8x1xf32> to vector<8x16xf32>
    %9 = arith.subf %5, %8 : vector<8x16xf32>
    %10 = tpu.iota {dimensions = array<i32: 1>} : vector<8x16xi32>
    %c0_4 = arith.constant 0 : index
    %c0_5 = arith.constant 0 : index
    %11 = vector.load %arg3[%c0_4, %c0_5] : memref<8x1xi32, #tpu.memory_space<vmem>>, vector<8x1xi32>
    %12 = vector.broadcast %11 : vector<8x1xi32> to vector<8x16xi32>
    %13 = arith.cmpi eq, %10, %12 : vector<8x16xi32>
    %cst_6 = arith.constant 0.000000e+00 : f32
    %14 = vector.broadcast %cst_6 : f32 to vector<8x16xf32>
    %15 = arith.select %13, %9, %14 : vector<8x16xi1>, vector<8x16xf32>
    %cst_7 = arith.constant dense<0.000000e+00> : vector<8xf32>
    %16 = vector.multi_reduction <add>, %15, %cst_7 [1] : vector<8x16xf32> to vector<8xf32>
    %17 = vector.shape_cast %16 : vector<8xf32> to vector<8x1xf32>
    %18 = math.exp %9 : vector<8x16xf32>
    %cst_8 = arith.constant dense<0.000000e+00> : vector<8xf32>
    %19 = vector.multi_reduction <add>, %18, %cst_8 [1] : vector<8x16xf32> to vector<8xf32>
    %20 = vector.shape_cast %19 : vector<8xf32> to vector<8x1xf32>
    %21 = math.exp %17 : vector<8x1xf32>
    %22 = arith.subf %20, %21 : vector<8x1xf32>
    %cst_9 = arith.constant 1.000000e+00 : f32
    %23 = vector.broadcast %cst_9 : f32 to vector<8x1xf32>
    %24 = arith.addf %22, %23 : vector<8x1xf32>
    %25 = math.log %24 : vector<8x1xf32>
    %26 = arith.subf %25, %17 : vector<8x1xf32>
    %cst_10 = arith.constant 0.000000e+00 : f32
    %27 = vector.broadcast %cst_10 : f32 to vector<8x1xf32>
    %28 = arith.maximumf %26, %27 : vector<8x1xf32>
    %c8_i32 = arith.constant 8 : i32
    %29 = arith.muli %arg0, %c8_i32 : i32
    %30 = tpu.iota {dimensions = array<i32: 0>} : vector<8x1xi32>
    %31 = vector.broadcast %29 : i32 to vector<8x1xi32>
    %32 = arith.addi %31, %30 : vector<8x1xi32>
    %c8_i32_11 = arith.constant 8 : i32
    %33 = vector.broadcast %c8_i32_11 : i32 to vector<8x1xi32>
    %34 = arith.cmpi slt, %32, %33 : vector<8x1xi32>
    %cst_12 = arith.constant 0.000000e+00 : f32
    %35 = vector.broadcast %cst_12 : f32 to vector<8x1xf32>
    %36 = arith.select %34, %28, %35 : vector<8x1xi1>, vector<8x1xf32>
    %37 = vector.shape_cast %36 : vector<8x1xf32> to vector<1x8x1xf32>
    %cst_13 = arith.constant dense<0.000000e+00> : vector<1xf32>
    %38 = vector.multi_reduction <add>, %37, %cst_13 [1, 2] : vector<1x8x1xf32> to vector<1xf32>
    %39 = vector.shape_cast %38 : vector<1xf32> to vector<1x1x1xf32>
    %40 = vector.extract %39[0, 0, 0] : f32 from vector<1x1x1xf32>
    %41 = tpu.iota {dimensions = array<i32: 1>} : vector<1x128xi32>
    %c0_i32 = arith.constant 0 : i32
    %42 = vector.broadcast %c0_i32 : i32 to vector<1x128xi32>
    %43 = arith.cmpi eq, %41, %42 : vector<1x128xi32>
    %cst_14 = arith.constant 0.000000e+00 : f32
    %44 = vector.broadcast %40 : f32 to vector<1x128xf32>
    %45 = vector.broadcast %cst_14 : f32 to vector<1x128xf32>
    %46 = arith.select %43, %44, %45 : vector<1x128xi1>, vector<1x128xf32>
    %c0_15 = arith.constant 0 : index
    %c0_16 = arith.constant 0 : index
    %47 = vector.load %arg4[%c0_15, %c0_16] : memref<1x128xf32, #tpu.memory_space<vmem>>, vector<1x128xf32>
    tpu.vector_store %arg4[%c0_15, %c0_16], %46 {strides = array<i32>} : memref<1x128xf32, #tpu.memory_space<vmem>>, vector<1x128xf32>,
    return
  }
  func.func @transform_0(%arg0: i32) -> (i32, i32) {
    %c0_i32 = arith.constant 0 : i32
    %c0_i32_0 = arith.constant 0 : i32
    %c0_i32_1 = arith.constant 0 : i32
    return %c0_i32, %c0_i32_0 : i32, i32
  }
  func.func @transform_1(%arg0: i32) -> (i32, i32) {
    %c0_i32 = arith.constant 0 : i32
    %c0_i32_0 = arith.constant 0 : i32
    return %arg0, %c0_i32 : i32, i32
  }
  func.func @transform_2(%arg0: i32) -> (i32, i32) {
    %c0_i32 = arith.constant 0 : i32
    %c0_i32_0 = arith.constant 0 : i32
    return %arg0, %c0_i32 : i32, i32
  }
  func.func @transform_3(%arg0: i32) -> (i32, i32) {
    %c0_i32 = arith.constant 0 : i32
    %c0_i32_0 = arith.constant 0 : i32
    return %c0_i32, %arg0 : i32, i32
  }
}

</mosaic_0001>

<llo_original>
// kernel: tpu_custom_call.1
$region0: #{tpu_custom_call.1}
  #allocation0 [shape = 'u32[]', space=smem, size = 0x4, offset = 0x4, fixed_abs, tag = 'smem constant byte address 0x4 - core index']
  #allocation1 [shape = 'u32[144,128]{1,0:T(1,128)}', space=vmem, size = 0x12000, scoped, tag = 'internal scratch']
  #allocation2 [shape = 'f32[1,1]{1,0:T(1,128)S(6)}', space=smem, size = 0x200, scoped, tag = 'scoped memory for tpu_custom_call.1']
  %s0 = inlined_call_operand.<no memory space> [shape: f32[1,1], index: 0, kind: input, shape index: {}]
  %s1 = inlined_call_operand.vmem [shape: f32[8,16], index: 1, kind: input, shape index: {}]
  %s2 = inlined_call_operand.vmem [shape: s32[8,1], index: 2, kind: input, shape index: {}]
  %s3 = inlined_call_operand.hbm [shape: f32[1,128], index: 3, kind: output, shape index: {}]
  %s4 = sld [smem:[#allocation0]]
  $region22: #{tpu_custom_call.1} parent=0
    _
  %s6 = ssub.s32 1, %s4
  %s7 = scalar_select 0, %s6, %s4
  %8 = sst [smem:[#allocation2]] %s0
  $region1: #{tpu_custom_call.1} parent=0
    #allocation3 [shape = 'u8[512]{0}', space=vmem, size = 0x400, scoped, tag = 'output window, operand 0, single buffered']
    #allocation4 [shape = 's32[1]{0}', space=sflag, size = 0x4, scoped, tag = 'scoped memory for tpu_custom_call.1']
    %9 = vsyncpa [#allocation4], 0
    // Predicated region
    $region2: #{tpu_custom_call.1} parent=1 // pred_check
      _
    $region3: #{tpu_custom_call.1} parent=1 // pred_check_branch
      %11 = sbr.rel (0) target = $region5
    $region4: #{tpu_custom_call.1} parent=1 // pred_region
      _
    $region5: #{tpu_custom_call.1} parent=1 // pred_fallthru
      _
    // Predicated region
    $region6: #{tpu_custom_call.1} parent=1 // pred_check
      _
    $region7: #{tpu_custom_call.1} parent=1 // pred_check_branch
      %13 = sbr.rel (0) target = $region9
    $region8: #{tpu_custom_call.1} parent=1 // pred_region
      _
    $region9: #{tpu_custom_call.1} parent=1 // pred_fallthru
      _
    // Predicated region
    $region10: #{tpu_custom_call.1} parent=1 // pred_check
      _
    $region11: #{tpu_custom_call.1} parent=1 // pred_check_branch
      %15 = sbr.rel (0) target = $region13
    $region12: #{tpu_custom_call.1} parent=1 // pred_region
      _
    $region13: #{tpu_custom_call.1} parent=1 // pred_fallthru
      _
    %s16 = sld [smem:[#allocation2]]
    %v17 = vld [vmem:[%s1] sm:$0xff]
    %v18 = vsub.f32 %v17, 0.6
    %v19 = vstv %s16
    %v20 = vmul.f32 %v19, %v18
    %vm21 = vcmask 130048
    %v22 = vsel %vm21, %v20, -inf
    %23 = vmax.xlane.f32.xlu0 %v22
    %v24 = vpop.xlane.xlu0 %23
    %v25 = vsub.f32 %v20, %v24
    %v26 = vlaneseq
    %v27 = vand.u32 %v26, 127
    %v28 = vld [vmem:[%s2] sm:$0xff]
    %29 = vset.pattern.permute.xlu0 0
    %30 = vperm.xlu0 %29, %v28
    %v31 = vpop.permute.xlu0 %30
    %vm32 = vcmp.eq.s32.totalorder %v27, %v31
    %v33 = vsel %vm32, %v25, 0.0
    %v34 = vsel %vm21, %v33, 0.0
    %35 = vadd.xlane.f32.xlu0 %v34
    %v36 = vpop.xlane.xlu0 %35
    %v37 = vmul.f32 %v25, 1.442695
    %v38 = vpow.pop %v37
    %v39 = vsel %vm21, %v38, 0.0
    %40 = vadd.xlane.f32.xlu0 %v39
    %v41 = vpop.xlane.xlu0 %40
    %v42 = vmul.f32 %v36, 1.442695
    %v43 = vpow.pop %v42
    %v44 = vsub.f32 %v41, %v43
    %v45 = vadd.f32 %v44, 1.0
    %v46 = vlog2.pop %v45
    %v47 = vmul.f32 %v46, 0.6931472
    %v48 = vsub.f32 %v47, %v36
    %v49 = vmax.f32 %v48, 0.0
    %s50 = smul.u32 0, 8
    %v51 = vlaneseq
    %v52 = vshrl.u32 %v51, 7
    %v53 = vstv %s50
    %v54 = vadd.s32 %v53, %v52
    %vm55 = vcmp.lt.s32.totalorder %v54, 8
    %v56 = vsel %vm55, %v49, 0.0
    %vm57 = vcmask 7168
    %v58 = vsel %vm57, %v56, 0.0
    %59 = vadd.xlane.f32.xlu0 %v58
    %v60 = vpop.xlane.xlu0 %59
    %v61 = vrot.slane %v60, 4
    %v62 = vadd.f32 %v60, %v61
    %v63 = vrot.slane %v62, 2
    %v64 = vadd.f32 %v62, %v63
    %v65 = vrot.slane %v64, 1
    %v66 = vadd.f32 %v64, %v65
    %s67 = vtos %v66
    %vm68 = vcmp.eq.s32.totalorder %v27, 0
    %v69 = vstv %s67
    %v70 = vsel %vm68, %v69, 0.0
    %71 = vst [vmem:[#allocation3] sm:$0x1] %v70
    // Predicated region
    $region14: #{tpu_custom_call.1} parent=1 // pred_check
      _
    $region15: #{tpu_custom_call.1} parent=1 // pred_check_branch
      %73 = sbr.rel (0) target = $region17
    $region16: #{tpu_custom_call.1} parent=1 // pred_region
      %s75 = ssub.s32 16, 16
      %76 = vsyncadd [#allocation4], %s75
      %s78 = sshll.u32 [#allocation3], 4
      %s79 = int_to_ptr.vmem [resolvable:$true] %s78
      %81 = dma.vmem_to_hbm [thread:$0]  %s79, 16, %s3, [#allocation4]
    $region17: #{tpu_custom_call.1} parent=1 // pred_fallthru
      _
    // Predicated region
    $region18: #{tpu_custom_call.1} parent=1 // pred_check
      _
    $region19: #{tpu_custom_call.1} parent=1 // pred_check_branch
      %83 = sbr.rel (0) target = $region21
    $region20: #{tpu_custom_call.1} parent=1 // pred_region
      %84 = dma.done [#allocation4], 16
    $region21: #{tpu_custom_call.1} parent=1 // pred_fallthru
      _
    %85 = vsyncpa [#allocation4], 1

</llo_original>
